<compile_context>
chip_gen: v6e
topology: v6e:2x2x1
jax: 0.10.0
libtpu: 0.0.40
codegen_flags: <defaults>
</compile_context>

<pallas_src>
import jax
import jax.numpy as jnp
from jax.experimental import pallas as pl
from jax.experimental.pallas import tpu as pltpu


def _make_scale_kernel(scale_factor, bias_factor):
    scale = float(scale_factor)
    bias = float(bias_factor)

    def kernel(x_ref, o_ref):
        # Compute in f32 with static constants; cast once on the final store.
        x = x_ref[...].astype(jnp.float32)
        o_ref[...] = (x * scale + bias).astype(o_ref.dtype)

    return kernel


def scale_layer(x, scale_factor, bias_factor, *, lanes=512,
                target_block_bytes=4 << 20):
    """Applies y = scale_factor * x + bias_factor elementwise via Pallas.

    Works for any input shape/dtype; internally flattens to a lane-dense
    (rows, lanes) slab with zero padding and slices the result back.
    """
    orig_shape = x.shape
    dtype = x.dtype
    total = int(x.size)
    itemsize = jnp.dtype(dtype).itemsize

    # Sublane packing requirement: 8 rows for 32-bit, 16 for 16-bit, 32 for 8-bit.
    packing = max(1, 4 // itemsize)
    min_rows = 8 * packing

    L = lanes  # lane-dense width, multiple of 128
    rows = pl.cdiv(total, L)
    rows_aligned = pl.cdiv(rows, min_rows) * min_rows

    # Row tile: ~target_block_bytes per block, multiple of min_rows, capped at
    # the (aligned) full row extent for small inputs (single block -> grid 1).
    ideal_tr = max(min_rows,
                   (target_block_bytes // (L * itemsize)) // min_rows * min_rows)
    tr = min(ideal_tr, rows_aligned)

    grid = pl.cdiv(rows_aligned, tr)
    rows_padded = grid * tr
    padded_total = rows_padded * L

    flat = x.reshape(-1)
    if padded_total != total:
        flat = jnp.pad(flat, (0, padded_total - total))
    x2d = flat.reshape(rows_padded, L)

    out2d = pl.pallas_call(
        _make_scale_kernel(scale_factor, bias_factor),
        out_shape=jax.ShapeDtypeStruct((rows_padded, L), dtype),
        grid=(grid,),
        in_specs=[pl.BlockSpec((tr, L), lambda i: (i, 0))],
        out_specs=pl.BlockSpec((tr, L), lambda i: (i, 0)),
        compiler_params=pltpu.CompilerParams(
            dimension_semantics=("parallel",),
        ),
    )(x2d)

    out = out2d.reshape(-1)
    if padded_total != total:
        out = out[:total]
    return out.reshape(orig_shape)


if __name__ == "__main__":
    key = jax.random.PRNGKey(0)
    x = jax.random.normal(key, (2, 4, 16, 16), dtype=jnp.float32)

    # Deterministic "parameters" from the module's __init__ args.
    scale_factor = 2.5
    bias_factor = -0.75

    y = scale_layer(x, scale_factor, bias_factor)
    y = jax.block_until_ready(y)

    # Reference check against plain JAX semantics of the PyTorch forward.
    y_ref = scale_factor * x + bias_factor
    assert y.shape == x.shape and y.dtype == x.dtype
    assert jnp.allclose(y, y_ref, atol=1e-6, rtol=1e-6)

    print("KERNEL_OK")
</pallas_src>

<mosaic_0001>
module attributes {stable_mosaic.version = 11 : i64} {
  func.func @kernel(%arg0: i32, %arg1: memref<8x512xf32, #tpu.memory_space<vmem>>, %arg2: memref<8x512xf32, #tpu.memory_space<vmem>>) attributes {dimension_semantics = [#tpu.dimension_semantics<parallel>], iteration_bounds = array<i64: 1>, scalar_prefetch = 0 : i64, scratch_operands = 0 : i64, tpu.core_type = #tpu.core_type<tc>, window_params = [{transform_indices = @transform_0, window_bounds = array<i64: 8, 512>}, {transform_indices = @transform_1, window_bounds = array<i64: 8, 512>}]} {
    %c0 = arith.constant 0 : index
    %c0_0 = arith.constant 0 : index
    %0 = vector.load %arg1[%c0, %c0_0] : memref<8x512xf32, #tpu.memory_space<vmem>>, vector<8x512xf32>
    %cst = arith.constant 2.500000e+00 : f32
    %1 = vector.broadcast %cst : f32 to vector<8x512xf32>
    %2 = arith.mulf %0, %1 : vector<8x512xf32>
    %cst_1 = arith.constant -7.500000e-01 : f32
    %3 = vector.broadcast %cst_1 : f32 to vector<8x512xf32>
    %4 = arith.addf %2, %3 : vector<8x512xf32>
    %c0_2 = arith.constant 0 : index
    %c0_3 = arith.constant 0 : index
    %5 = vector.load %arg2[%c0_2, %c0_3] : memref<8x512xf32, #tpu.memory_space<vmem>>, vector<8x512xf32>
    tpu.vector_store %arg2[%c0_2, %c0_3], %4 {strides = array<i32>} : memref<8x512xf32, #tpu.memory_space<vmem>>, vector<8x512xf32>,
    return
  }
  func.func @transform_0(%arg0: i32) -> (i32, i32) {
    %c0_i32 = arith.constant 0 : i32
    %c0_i32_0 = arith.constant 0 : i32
    return %arg0, %c0_i32 : i32, i32
  }
  func.func @transform_1(%arg0: i32) -> (i32, i32) {
    %c0_i32 = arith.constant 0 : i32
    %c0_i32_0 = arith.constant 0 : i32
    return %arg0, %c0_i32 : i32, i32
  }
}

</mosaic_0001>

<llo_original>
// kernel: tpu_custom_call.1
$region0: #{tpu_custom_call.1}
  #allocation0 [shape = 'u32[]', space=smem, size = 0x4, offset = 0x4, fixed_abs, tag = 'smem constant byte address 0x4 - core index']
  #allocation1 [shape = 'u32[144,128]{1,0:T(1,128)}', space=vmem, size = 0x12000, scoped, tag = 'internal scratch']
  %s0 = inlined_call_operand.hbm [shape: f32[8,512], index: 0, kind: input, shape index: {}]
  %s1 = inlined_call_operand.hbm [shape: f32[8,512], index: 1, kind: output, shape index: {}]
  %s2 = sld [smem:[#allocation0]]
  $region18: #{tpu_custom_call.1} parent=0
    _
  %s4 = ssub.s32 1, %s2
  %s5 = scalar_select 0, %s4, %s2
  $region1: #{tpu_custom_call.1} parent=0
    #allocation2 [shape = 'u8[16384]{0}', space=vmem, size = 0x4000, scoped, tag = 'input window, operand 0, single buffered']
    #allocation3 [shape = 's32[1]{0}', space=sflag, size = 0x4, scoped, tag = 'scoped memory for tpu_custom_call.1']
    #allocation4 [shape = 's32[1]{0}', space=sflag, size = 0x4, scoped, tag = 'scoped memory for tpu_custom_call.1']
    #allocation5 [shape = 'u8[16384]{0}', space=vmem, size = 0x4000, scoped, tag = 'output window, operand 0, single buffered']
    %6 = vsyncpa [#allocation3], 0
    %7 = vsyncpa [#allocation4], 0
    // Predicated region
    $region2: #{tpu_custom_call.1} parent=1 // pred_check
      _
    $region3: #{tpu_custom_call.1} parent=1 // pred_check_branch
      %9 = sbr.rel (0) target = $region5
    $region4: #{tpu_custom_call.1} parent=1 // pred_region
      %s11 = ssub.s32 512, 512
      %12 = vsyncadd [#allocation3], %s11
      %s14 = sshll.u32 [#allocation2], 4
      %s15 = int_to_ptr.vmem [resolvable:$true] %s14
      %17 = dma.hbm_to_vmem [thread:$0]  %s0, 512, %s15, [#allocation3]
    $region5: #{tpu_custom_call.1} parent=1 // pred_fallthru
      _
    // Predicated region
    $region6: #{tpu_custom_call.1} parent=1 // pred_check
      _
    $region7: #{tpu_custom_call.1} parent=1 // pred_check_branch
      %19 = sbr.rel (0) target = $region9
    $region8: #{tpu_custom_call.1} parent=1 // pred_region
      %20 = dma.done [#allocation3], 512
    $region9: #{tpu_custom_call.1} parent=1 // pred_fallthru
      _
    %v21 = vld [vmem:[#allocation2] sm:$0xff]
    %v22 = vld [vmem:[#allocation2 + $0x8] sm:$0xff]
    %v23 = vld [vmem:[#allocation2 + $0x10] sm:$0xff]
    %v24 = vld [vmem:[#allocation2 + $0x18] sm:$0xff]
    %v25 = vmul.f32 %v21, 2.5
    %v26 = vmul.f32 %v22, 2.5
    %v27 = vmul.f32 %v23, 2.5
    %v28 = vmul.f32 %v24, 2.5
    %v29 = vadd.f32 %v25, -0.75
    %v30 = vadd.f32 %v26, -0.75
    %v31 = vadd.f32 %v27, -0.75
    %v32 = vadd.f32 %v28, -0.75
    %33 = vst [vmem:[#allocation5] sm:$0xff] %v29
    %34 = vst [vmem:[#allocation5 + $0x8] sm:$0xff] %v30
    %35 = vst [vmem:[#allocation5 + $0x10] sm:$0xff] %v31
    %36 = vst [vmem:[#allocation5 + $0x18] sm:$0xff] %v32
    // Predicated region
    $region10: #{tpu_custom_call.1} parent=1 // pred_check
      _
    $region11: #{tpu_custom_call.1} parent=1 // pred_check_branch
      %38 = sbr.rel (0) target = $region13
    $region12: #{tpu_custom_call.1} parent=1 // pred_region
      %s40 = ssub.s32 512, 512
      %41 = vsyncadd [#allocation4], %s40
      %s43 = sshll.u32 [#allocation5], 4
      %s44 = int_to_ptr.vmem [resolvable:$true] %s43
      %46 = dma.vmem_to_hbm [thread:$0]  %s44, 512, %s1, [#allocation4]
    $region13: #{tpu_custom_call.1} parent=1 // pred_fallthru
      _
    // Predicated region
    $region14: #{tpu_custom_call.1} parent=1 // pred_check
      _
    $region15: #{tpu_custom_call.1} parent=1 // pred_check_branch
      %48 = sbr.rel (0) target = $region17
    $region16: #{tpu_custom_call.1} parent=1 // pred_region
      %49 = dma.done [#allocation4], 512
    $region17: #{tpu_custom_call.1} parent=1 // pred_fallthru
      _
    %50 = vsyncpa [#allocation3], 1
    %51 = vsyncpa [#allocation4], 1

</llo_original>
